<compile_context>
chip_gen: v7x
topology: tpu7x:2x2x1
jax: 0.10.0
libtpu: 0.0.40
codegen_flags: <defaults>
</compile_context>

<pallas_src>
import functools

import jax
import jax.numpy as jnp
from jax.experimental import pallas as pl
from jax.experimental.pallas import tpu as pltpu


_VMEM_BUDGET = 48 << 20  # conservative: fits v7x's 64 MiB physical VMEM with headroom


def _round_up(n, m):
    return ((n + m - 1) // m) * m


# ---------------------------------------------------------------------------
# Kernel
# ---------------------------------------------------------------------------
def _mtl_kernel(
    x_ref,                   # [bb, input_dim]       (x dtype; cast in-VMEM)
    w_sh_ref, b_sh_ref,      # shared trunk          [input_dim, S], [1, S]
    w_h1_ref, b_h1_ref,      # fused head hidden     [S, H],        [1, H]
    w_h2_ref, b_h2_ref,      # fused head output     [H, out_cols], [1, out_cols]
    out_ref,                 # [bb, out_cols]  (col 0 = cls, col 1 = reg)
):
    compute_dtype = w_sh_ref.dtype

    # Shared trunk: Linear -> ReLU (f32 accumulation; f32 bias/ReLU on the VPU).
    x = x_ref[...].astype(compute_dtype)
    shared = jnp.dot(x, w_sh_ref[...], preferred_element_type=jnp.float32)
    shared = jnp.maximum(shared + b_sh_ref[...], 0.0)

    # Fused head hidden layer: ONE matmul serving both heads.
    h = jnp.dot(shared.astype(compute_dtype), w_h1_ref[...],
                preferred_element_type=jnp.float32)
    h = jnp.maximum(h + b_h1_ref[...], 0.0)

    # Fused block-diagonal output layer: ONE matmul -> [bb, out_cols].
    out = jnp.dot(h.astype(compute_dtype), w_h2_ref[...],
                  preferred_element_type=jnp.float32)
    out_ref[...] = (out + b_h2_ref[...]).astype(out_ref.dtype)


# ---------------------------------------------------------------------------
# One-time parameter preparation (fusion + casts) — runs eagerly, ONCE.
# ---------------------------------------------------------------------------
def prepare_params(params, *, param_dtype=jnp.bfloat16):
    """Fuse the two heads and cast MXU operands once; reuse across calls.

    `params` is the 10-tuple from init_params (weights stored as [in, out]).
    Returns (w_sh, b_sh, w_h1, b_h1, w_h2, b_h2) consumed by the kernel.
    """
    w_sh, b_sh, w_c1, b_c1, w_c2, b_c2, w_r1, b_r1, w_r2, b_r2 = params
    input_dim, _ = w_sh.shape
    cls_dim = w_c1.shape[1]
    reg_dim = w_r1.shape[1]
    head_dim = cls_dim + reg_dim

    # Fused head hidden layer: [shared, cls+reg] — exact.
    w_h1 = jnp.concatenate([w_c1, w_r1], axis=1)
    b_h1 = jnp.concatenate([b_c1, b_r1], axis=1)

    # Fused block-diagonal output layer; zero blocks contribute exactly zero.
    # Lane-dense (128-wide) output only once x traffic dominates the padding.
    out_cols = 128 if input_dim >= 128 else 2
    w_h2 = jnp.zeros((head_dim, out_cols), jnp.float32)
    w_h2 = w_h2.at[:cls_dim, 0].set(w_c2[:, 0])
    w_h2 = w_h2.at[cls_dim:, 1].set(w_r2[:, 0])
    b_h2 = jnp.zeros((1, out_cols), jnp.float32)
    b_h2 = b_h2.at[:, 0:1].set(b_c2)
    b_h2 = b_h2.at[:, 1:2].set(b_r2)

    # MXU operands in the compute dtype; biases stay f32 (VPU epilogue).
    return (
        w_sh.astype(param_dtype), b_sh.astype(jnp.float32),
        w_h1.astype(param_dtype), b_h1.astype(jnp.float32),
        w_h2.astype(param_dtype), b_h2.astype(jnp.float32),
    )


# ---------------------------------------------------------------------------
# Tiling / VMEM heuristics (static, trace-time Python)
# ---------------------------------------------------------------------------
def _vmem_estimate(bb, input_dim, shared_dim, head_dim, out_cols,
                   x_itemsize, w_itemsize):
    x_tile = bb * input_dim * x_itemsize
    out_tile = bb * out_cols * 4
    weights = (input_dim * shared_dim + shared_dim * head_dim
               + head_dim * out_cols) * w_itemsize
    biases = (shared_dim + head_dim + out_cols) * 4
    inter = 2 * bb * (shared_dim + head_dim + out_cols) * 4  # f32 temporaries
    # x / out tiles double-buffered; weights & biases single-buffered.
    return 2 * (x_tile + out_tile) + weights + biases + inter


def _choose_block_batch(B, input_dim, shared_dim, head_dim, out_cols,
                        x_itemsize, w_itemsize):
    # Packed sublane granularity of the MXU compute dtype (16 bf16 / 8 f32).
    g = 16 if w_itemsize < 4 else 8
    # Target >= 2 grid steps so v7x's 2 TensorCores both get work; cap at 512.
    bb = max(g, min(512, _round_up(pl.cdiv(B, 2), g)))
    while bb > g and _vmem_estimate(bb, input_dim, shared_dim, head_dim,
                                    out_cols, x_itemsize, w_itemsize) > _VMEM_BUDGET:
        bb = max(g, _round_up(bb // 2, g))
    return bb


# ---------------------------------------------------------------------------
# Forward
# ---------------------------------------------------------------------------
@functools.partial(jax.jit, static_argnames=("block_batch",))
def multi_task_news_feed_forward(x, prepared, *, block_batch=None):
    """Fused multi-task forward. Returns (cls_logits [B,1], reg_output [B,1]).

    `prepared` is the output of prepare_params().  For minimal HBM traffic on
    mem-bound shapes, pass x already in the compute dtype (e.g. bf16); any
    float dtype is accepted and cast in-VMEM inside the kernel.
    """
    B, input_dim = x.shape
    w_sh, b_sh, w_h1, b_h1, w_h2, b_h2 = prepared
    shared_dim = w_sh.shape[1]
    head_dim = w_h1.shape[1]
    out_cols = w_h2.shape[1]

    if block_batch is None:
        block_batch = _choose_block_batch(
            B, input_dim, shared_dim, head_dim, out_cols,
            x.dtype.itemsize, w_sh.dtype.itemsize)

    grid = (pl.cdiv(B, block_batch),)   # ragged tail -> masked edge block

    x_map = lambda i: (i, 0)
    bcast = lambda i: (0, 0)

    def const_spec(shape):
        # Constant index_map across the grid -> single-buffer in VMEM.
        return pl.BlockSpec(shape, bcast, pipeline_mode=pl.Buffered(1))

    vmem_limit = int(min(
        _VMEM_BUDGET,
        max(32 << 20,
            2 * _vmem_estimate(block_batch, input_dim, shared_dim, head_dim,
                               out_cols, x.dtype.itemsize, w_sh.dtype.itemsize))))

    out = pl.pallas_call(
        _mtl_kernel,
        out_shape=jax.ShapeDtypeStruct((B, out_cols), jnp.float32),
        grid_spec=pltpu.PrefetchScalarGridSpec(
            num_scalar_prefetch=0,
            grid=grid,
            in_specs=[
                pl.BlockSpec((block_batch, input_dim), x_map),
                const_spec((input_dim, shared_dim)),
                const_spec((1, shared_dim)),
                const_spec((shared_dim, head_dim)),
                const_spec((1, head_dim)),
                const_spec((head_dim, out_cols)),
                const_spec((1, out_cols)),
            ],
            out_specs=pl.BlockSpec((block_batch, out_cols), x_map),
        ),
        compiler_params=pltpu.CompilerParams(
            dimension_semantics=("parallel",),   # v7x: shard batch tiles over 2 TCs
            vmem_limit_bytes=vmem_limit,
        ),
    )(x, w_sh, b_sh, w_h1, b_h1, w_h2, b_h2)

    return out[:, 0:1], out[:, 1:2]


# ---------------------------------------------------------------------------
# Parameter init + pure-JAX reference (for correctness checking)
# ---------------------------------------------------------------------------
def init_params(key, input_dim, shared_hidden_dim, cls_hidden_dim, reg_hidden_dim):
    """Deterministic synthetic parameter init (PyTorch-like uniform fan-in)."""
    ks = jax.random.split(key, 10)

    def linear(kw, kb, fan_in, fan_out):
        bound = 1.0 / jnp.sqrt(fan_in)
        w = jax.random.uniform(kw, (fan_in, fan_out), jnp.float32, -bound, bound)
        b = jax.random.uniform(kb, (1, fan_out), jnp.float32, -bound, bound)
        return w, b

    w_sh, b_sh = linear(ks[0], ks[1], input_dim, shared_hidden_dim)
    w_c1, b_c1 = linear(ks[2], ks[3], shared_hidden_dim, cls_hidden_dim)
    w_c2, b_c2 = linear(ks[4], ks[5], cls_hidden_dim, 1)
    w_r1, b_r1 = linear(ks[6], ks[7], shared_hidden_dim, reg_hidden_dim)
    w_r2, b_r2 = linear(ks[8], ks[9], reg_hidden_dim, 1)
    return (w_sh, b_sh, w_c1, b_c1, w_c2, b_c2, w_r1, b_r1, w_r2, b_r2)


def reference_forward(x, params):
    w_sh, b_sh, w_c1, b_c1, w_c2, b_c2, w_r1, b_r1, w_r2, b_r2 = params
    shared = jnp.maximum(x @ w_sh + b_sh, 0.0)
    cls = jnp.maximum(shared @ w_c1 + b_c1, 0.0) @ w_c2 + b_c2
    reg = jnp.maximum(shared @ w_r1 + b_r1, 0.0) @ w_r2 + b_r2
    return cls, reg


if __name__ == "__main__":
    # Small shapes consistent with the module's forward.
    batch = 16
    input_dim = 32
    shared_hidden_dim = 64
    cls_hidden_dim = 32
    reg_hidden_dim = 32

    key = jax.random.PRNGKey(0)
    k_x, k_p = jax.random.split(key)
    x = jax.random.normal(k_x, (batch, input_dim), dtype=jnp.float32)
    params = init_params(k_p, input_dim, shared_hidden_dim,
                         cls_hidden_dim, reg_hidden_dim)

    cls_ref, reg_ref = reference_forward(x, params)

    # ---- f32 compute path: must match the PyTorch-equivalent reference tightly.
    prepared_f32 = prepare_params(params, param_dtype=jnp.float32)
    cls_out, reg_out = multi_task_news_feed_forward(x, prepared_f32)
    jax.block_until_ready((cls_out, reg_out))
    assert cls_out.shape == (batch, 1) and reg_out.shape == (batch, 1)
    assert jnp.allclose(cls_out, cls_ref, atol=1e-5, rtol=1e-5)
    assert jnp.allclose(reg_out, reg_ref, atol=1e-5, rtol=1e-5)

    # ---- default bf16 MXU-operand path (recommended on v5e/v6e/v7x).
    # Intermediates are cast to bf16 between layers -> expected small deviation.
    prepared_bf16 = prepare_params(params)   # param_dtype=jnp.bfloat16
    cls_bf, reg_bf = multi_task_news_feed_forward(x, prepared_bf16)
    jax.block_until_ready((cls_bf, reg_bf))
    assert jnp.allclose(cls_bf, cls_ref, atol=5e-2, rtol=5e-2)
    assert jnp.allclose(reg_bf, reg_ref, atol=5e-2, rtol=5e-2)

    # ---- ragged batch (B not a multiple of block_batch): exercises the
    # masked edge-block path (no wrapper-side padding / slicing copies).
    x_rag = jax.random.normal(k_x, (batch + 5, input_dim), dtype=jnp.float32)
    cls_r_ref, reg_r_ref = reference_forward(x_rag, params)
    cls_r, reg_r = multi_task_news_feed_forward(x_rag, prepared_f32)
    jax.block_until_ready((cls_r, reg_r))
    assert cls_r.shape == (batch + 5, 1) and reg_r.shape == (batch + 5, 1)
    assert jnp.allclose(cls_r, cls_r_ref, atol=1e-5, rtol=1e-5)
    assert jnp.allclose(reg_r, reg_r_ref, atol=1e-5, rtol=1e-5)

    print("KERNEL_OK")
</pallas_src>

<mosaic_0001>
module attributes {stable_mosaic.version = 11 : i64} {
  func.func @_mtl_kernel(%arg0: i32, %arg1: memref<8x32xf32, #tpu.memory_space<vmem>>, %arg2: memref<32x64xf32, #tpu.memory_space<vmem>>, %arg3: memref<1x64xf32, #tpu.memory_space<vmem>>, %arg4: memref<64x64xf32, #tpu.memory_space<vmem>>, %arg5: memref<1x64xf32, #tpu.memory_space<vmem>>, %arg6: memref<64x2xf32, #tpu.memory_space<vmem>>, %arg7: memref<1x2xf32, #tpu.memory_space<vmem>>, %arg8: memref<8x2xf32, #tpu.memory_space<vmem>>) attributes {dimension_semantics = [#tpu.dimension_semantics<parallel>], iteration_bounds = array<i64: 2>, scalar_prefetch = 0 : i64, scratch_operands = 0 : i64, tpu.core_type = #tpu.core_type<tc>, window_params = [{transform_indices = @transform_0, window_bounds = array<i64: 8, 32>}, {pipeline_mode = #tpu.pipeline_mode<synchronous>, transform_indices = @transform_1, window_bounds = array<i64: 32, 64>}, {pipeline_mode = #tpu.pipeline_mode<synchronous>, transform_indices = @transform_2, window_bounds = array<i64: 1, 64>}, {pipeline_mode = #tpu.pipeline_mode<synchronous>, transform_indices = @transform_3, window_bounds = array<i64: 64, 64>}, {pipeline_mode = #tpu.pipeline_mode<synchronous>, transform_indices = @transform_4, window_bounds = array<i64: 1, 64>}, {pipeline_mode = #tpu.pipeline_mode<synchronous>, transform_indices = @transform_5, window_bounds = array<i64: 64, 2>}, {pipeline_mode = #tpu.pipeline_mode<synchronous>, transform_indices = @transform_6, window_bounds = array<i64: 1, 2>}, {transform_indices = @transform_7, window_bounds = array<i64: 8, 2>}]} {
    %c0 = arith.constant 0 : index
    %c0_0 = arith.constant 0 : index
    %0 = vector.load %arg1[%c0, %c0_0] : memref<8x32xf32, #tpu.memory_space<vmem>>, vector<8x32xf32>
    %c0_1 = arith.constant 0 : index
    %c0_2 = arith.constant 0 : index
    %1 = vector.load %arg2[%c0_1, %c0_2] : memref<32x64xf32, #tpu.memory_space<vmem>>, vector<32x64xf32>
    %cst = arith.constant dense<0.000000e+00> : vector<8x64xf32>
    %2 = tpu.matmul %0, %1, %cst {dimension_numbers = #tpu.dot_dimension_numbers<[1], [0], [0], [1], [0, 0, 1, 1], [], []>} : vector<8x32xf32>, vector<32x64xf32>, vector<8x64xf32> -> vector<8x64xf32>
    %c0_3 = arith.constant 0 : index
    %c0_4 = arith.constant 0 : index
    %3 = vector.load %arg3[%c0_3, %c0_4] : memref<1x64xf32, #tpu.memory_space<vmem>>, vector<1x64xf32>
    %4 = vector.broadcast %3 : vector<1x64xf32> to vector<8x64xf32>
    %5 = arith.addf %2, %4 : vector<8x64xf32>
    %cst_5 = arith.constant 0.000000e+00 : f32
    %6 = vector.broadcast %cst_5 : f32 to vector<8x64xf32>
    %7 = arith.maximumf %5, %6 : vector<8x64xf32>
    %c0_6 = arith.constant 0 : index
    %c0_7 = arith.constant 0 : index
    %8 = vector.load %arg4[%c0_6, %c0_7] : memref<64x64xf32, #tpu.memory_space<vmem>>, vector<64x64xf32>
    %cst_8 = arith.constant dense<0.000000e+00> : vector<8x64xf32>
    %9 = tpu.matmul %7, %8, %cst_8 {dimension_numbers = #tpu.dot_dimension_numbers<[1], [0], [0], [1], [0, 0, 1, 1], [], []>} : vector<8x64xf32>, vector<64x64xf32>, vector<8x64xf32> -> vector<8x64xf32>
    %c0_9 = arith.constant 0 : index
    %c0_10 = arith.constant 0 : index
    %10 = vector.load %arg5[%c0_9, %c0_10] : memref<1x64xf32, #tpu.memory_space<vmem>>, vector<1x64xf32>
    %11 = vector.broadcast %10 : vector<1x64xf32> to vector<8x64xf32>
    %12 = arith.addf %9, %11 : vector<8x64xf32>
    %cst_11 = arith.constant 0.000000e+00 : f32
    %13 = vector.broadcast %cst_11 : f32 to vector<8x64xf32>
    %14 = arith.maximumf %12, %13 : vector<8x64xf32>
    %c0_12 = arith.constant 0 : index
    %c0_13 = arith.constant 0 : index
    %15 = vector.load %arg6[%c0_12, %c0_13] : memref<64x2xf32, #tpu.memory_space<vmem>>, vector<64x2xf32>
    %cst_14 = arith.constant dense<0.000000e+00> : vector<8x2xf32>
    %16 = tpu.matmul %14, %15, %cst_14 {dimension_numbers = #tpu.dot_dimension_numbers<[1], [0], [0], [1], [0, 0, 1, 1], [], []>} : vector<8x64xf32>, vector<64x2xf32>, vector<8x2xf32> -> vector<8x2xf32>
    %c0_15 = arith.constant 0 : index
    %c0_16 = arith.constant 0 : index
    %17 = vector.load %arg7[%c0_15, %c0_16] : memref<1x2xf32, #tpu.memory_space<vmem>>, vector<1x2xf32>
    %18 = vector.broadcast %17 : vector<1x2xf32> to vector<8x2xf32>
    %19 = arith.addf %16, %18 : vector<8x2xf32>
    %c0_17 = arith.constant 0 : index
    %c0_18 = arith.constant 0 : index
    %20 = vector.load %arg8[%c0_17, %c0_18] : memref<8x2xf32, #tpu.memory_space<vmem>>, vector<8x2xf32>
    tpu.vector_store %arg8[%c0_17, %c0_18], %19 {strides = array<i32>} : memref<8x2xf32, #tpu.memory_space<vmem>>, vector<8x2xf32>,
    return
  }
  func.func @transform_0(%arg0: i32) -> (i32, i32) {
    %c0_i32 = arith.constant 0 : i32
    %c0_i32_0 = arith.constant 0 : i32
    return %arg0, %c0_i32 : i32, i32
  }
  func.func @transform_1(%arg0: i32) -> (i32, i32) {
    %c0_i32 = arith.constant 0 : i32
    %c0_i32_0 = arith.constant 0 : i32
    %c0_i32_1 = arith.constant 0 : i32
    return %c0_i32, %c0_i32_0 : i32, i32
  }
  func.func @transform_2(%arg0: i32) -> (i32, i32) {
    %c0_i32 = arith.constant 0 : i32
    %c0_i32_0 = arith.constant 0 : i32
    %c0_i32_1 = arith.constant 0 : i32
    return %c0_i32, %c0_i32_0 : i32, i32
  }
  func.func @transform_3(%arg0: i32) -> (i32, i32) {
    %c0_i32 = arith.constant 0 : i32
    %c0_i32_0 = arith.constant 0 : i32
    %c0_i32_1 = arith.constant 0 : i32
    return %c0_i32, %c0_i32_0 : i32, i32
  }
  func.func @transform_4(%arg0: i32) -> (i32, i32) {
    %c0_i32 = arith.constant 0 : i32
    %c0_i32_0 = arith.constant 0 : i32
    %c0_i32_1 = arith.constant 0 : i32
    return %c0_i32, %c0_i32_0 : i32, i32
  }
  func.func @transform_5(%arg0: i32) -> (i32, i32) {
    %c0_i32 = arith.constant 0 : i32
    %c0_i32_0 = arith.constant 0 : i32
    %c0_i32_1 = arith.constant 0 : i32
    return %c0_i32, %c0_i32_0 : i32, i32
  }
  func.func @transform_6(%arg0: i32) -> (i32, i32) {
    %c0_i32 = arith.constant 0 : i32
    %c0_i32_0 = arith.constant 0 : i32
    %c0_i32_1 = arith.constant 0 : i32
    return %c0_i32, %c0_i32_0 : i32, i32
  }
  func.func @transform_7(%arg0: i32) -> (i32, i32) {
    %c0_i32 = arith.constant 0 : i32
    %c0_i32_0 = arith.constant 0 : i32
    return %arg0, %c0_i32 : i32, i32
  }
}

</mosaic_0001>

<llo_original>
// kernel: multi_task_news_feed_forward.1
$region0: #{multi_task_news_feed_forward.1}
  #allocation0 [shape = 'u32[]', space=smem, size = 0x4, offset = 0x4, fixed_abs, tag = 'smem constant byte address 0x4 - core index']
  #allocation1 [shape = 'u32[144,128]{1,0:T(1,128)}', space=vmem, size = 0x12000, scoped, tag = 'internal scratch']
  %s0 = inlined_call_operand.hbm [shape: f32[16,32], index: 0, kind: input, shape index: {}]
  %s1 = inlined_call_operand.hbm [shape: f32[32,64], index: 1, kind: input, shape index: {}]
  %s2 = inlined_call_operand.vmem [shape: f32[1,64], index: 2, kind: input, shape index: {}]
  %s3 = inlined_call_operand.vmem [shape: f32[64,64], index: 3, kind: input, shape index: {}]
  %s4 = inlined_call_operand.vmem [shape: f32[1,64], index: 4, kind: input, shape index: {}]
  %s5 = inlined_call_operand.vmem [shape: f32[64,2], index: 5, kind: input, shape index: {}]
  %s6 = inlined_call_operand.vmem [shape: f32[1,2], index: 6, kind: input, shape index: {}]
  %s7 = inlined_call_operand.vmem [shape: f32[16,2], index: 7, kind: output, shape index: {}]
  %s8 = sld [smem:[#allocation0]]
  $region69: #{multi_task_news_feed_forward.1} parent=0
    _
  %s10 = ssub.s32 1, %s8
  %s11 = scalar_select 0, %s10, %s8
  $region1: #{multi_task_news_feed_forward.1} parent=0
    #allocation2 [shape = 'u8[8192]{0}', space=vmem, size = 0x2000, scoped, tag = 'input window, operand 0']
    #allocation3 [shape = 's32[2]{0}', space=sflag, size = 0x8, scoped, tag = 'scoped memory for multi_task_news_feed_forward.1']
    #allocation4 [shape = 'u8[16384]{0}', space=vmem, size = 0x4000, scoped, tag = 'input window, operand 1, single buffered']
    #allocation5 [shape = 's32[1]{0}', space=sflag, size = 0x4, scoped, tag = 'scoped memory for multi_task_news_feed_forward.1']
    %12 = vsyncpa [#allocation3], 0
    %s13 = scalar_lea.sflag [#allocation3], 1
    %14 = vsyncpa %s13, 0
    %15 = vsyncpa [#allocation5], 0
    loop: start=0, step=1, limit=4
    $region2: #{multi_task_news_feed_forward.1} parent=1 // loop_pre_header
      _
    $region3: #{multi_task_news_feed_forward.1} parent=1 // loop_header
      %s17 = sphi 0, %s21
      %p18 = scmp.ge.s32.totalorder %s17, 4
      %s27 = sphi 0, %s29
      %s30 = sphi 0, %s27
      %s31 = sphi 0, %s30
      %s47 = sphi 0, %s31
      %s51 = sphi 0, %s51
      %s53 = sphi 0, %s51
      %s54 = sphi 0, %s53
      %s68 = sphi 0, %s54
      %s72 = sphi 0, %s72
      %s74 = sphi 0, %s72
      %s75 = sphi 0, %s74
      %s89 = sphi 0, %s75
      %s93 = sphi 0, %s93
      %s95 = sphi 0, %s93
      %s96 = sphi 0, %s95
      %s110 = sphi 0, %s96
      %s114 = sphi 0, %s114
      %s116 = sphi 0, %s114
      %s117 = sphi 0, %s116
      %s131 = sphi 0, %s117
      %s135 = sphi 0, %s135
      %s137 = sphi 0, %s135
      %s138 = sphi 0, %s137
      %s152 = sphi 0, %s138
      %s156 = sphi 0, %s156
      %s158 = sphi 0, %s156
      %s159 = sphi 0, %s158
      %s173 = sphi 0, %s159
      %s179 = sphi 0, %s181
      %s182 = sphi 0, %s179
      %s183 = sphi 0, %s182
      %s199 = sphi 0, %s183
    $region4: #{multi_task_news_feed_forward.1} parent=1 // loop_header_branch
      %20 = sbr.rel (%p18) target = $region8
    $region5: #{multi_task_news_feed_forward.1} parent=1 // loop_body
      %s22 = ssub.s32 %s17, 1
      %s23 = ssub.s32 %s17, 2
      %s24 = sadd.s32 %s17, 1
      %s25 = ssub.s32 %s17, %s24
      %p26 = scmp.eq.s32.totalorder %s25, 0
      %s28 = sadd.s32 %s27, 1
      %s29 = scalar_select %p26, %s27, %s28
      %p32 = pneg %p26
      %p33 = scmp.eq.s32.totalorder %s17, 1
      %p34 = por %p32, %p33
      %p35 = scmp.ne.s32.totalorder %s27, %s30
      %p36 = scmp.eq.s32.totalorder %s17, 0
      %p37 = por %p35, %p36
      %p38 = scmp.ne.s32.totalorder %s27, %s30
      %p39 = scmp.eq.s32.totalorder %s22, 1
      %p40 = por %p38, %p39
      %p41 = scmp.ne.s32.totalorder %s30, %s31
      %p42 = scmp.eq.s32.totalorder %s22, 0
      %p43 = por %p41, %p42
      %p44 = scmp.ne.s32.totalorder %s30, %s31
      %p45 = scmp.eq.s32.totalorder %s23, 1
      %p46 = por %p44, %p45
      %p48 = scmp.ne.s32.totalorder %s31, %s47
      %p49 = scmp.eq.s32.totalorder %s23, 0
      %p50 = por %p48, %p49
      %s52 = sadd.s32 %s51, 1
      %p55 = scmp.eq.s32.totalorder %s17, 1
      %p56 = scmp.ne.s32.totalorder %s51, %s53
      %p57 = scmp.eq.s32.totalorder %s17, 0
      %p58 = por %p56, %p57
      %p59 = scmp.ne.s32.totalorder %s51, %s53
      %p60 = scmp.eq.s32.totalorder %s22, 1
      %p61 = por %p59, %p60
      %p62 = scmp.ne.s32.totalorder %s53, %s54
      %p63 = scmp.eq.s32.totalorder %s22, 0
      %p64 = por %p62, %p63
      %p65 = scmp.ne.s32.totalorder %s53, %s54
      %p66 = scmp.eq.s32.totalorder %s23, 1
      %p67 = por %p65, %p66
      %p69 = scmp.ne.s32.totalorder %s54, %s68
      %p70 = scmp.eq.s32.totalorder %s23, 0
      %p71 = por %p69, %p70
      %s73 = sadd.s32 %s72, 1
      %p76 = scmp.eq.s32.totalorder %s17, 1
      %p77 = scmp.ne.s32.totalorder %s72, %s74
      %p78 = scmp.eq.s32.totalorder %s17, 0
      %p79 = por %p77, %p78
      %p80 = scmp.ne.s32.totalorder %s72, %s74
      %p81 = scmp.eq.s32.totalorder %s22, 1
      %p82 = por %p80, %p81
      %p83 = scmp.ne.s32.totalorder %s74, %s75
      %p84 = scmp.eq.s32.totalorder %s22, 0
      %p85 = por %p83, %p84
      %p86 = scmp.ne.s32.totalorder %s74, %s75
      %p87 = scmp.eq.s32.totalorder %s23, 1
      %p88 = por %p86, %p87
      %p90 = scmp.ne.s32.totalorder %s75, %s89
      %p91 = scmp.eq.s32.totalorder %s23, 0
      %p92 = por %p90, %p91
      %s94 = sadd.s32 %s93, 1
      %p97 = scmp.eq.s32.totalorder %s17, 1
      %p98 = scmp.ne.s32.totalorder %s93, %s95
      %p99 = scmp.eq.s32.totalorder %s17, 0
      %p100 = por %p98, %p99
      %p101 = scmp.ne.s32.totalorder %s93, %s95
      %p102 = scmp.eq.s32.totalorder %s22, 1
      %p103 = por %p101, %p102
      %p104 = scmp.ne.s32.totalorder %s95, %s96
      %p105 = scmp.eq.s32.totalorder %s22, 0
      %p106 = por %p104, %p105
      %p107 = scmp.ne.s32.totalorder %s95, %s96
      %p108 = scmp.eq.s32.totalorder %s23, 1
      %p109 = por %p107, %p108
      %p111 = scmp.ne.s32.totalorder %s96, %s110
      %p112 = scmp.eq.s32.totalorder %s23, 0
      %p113 = por %p111, %p112
      %s115 = sadd.s32 %s114, 1
      %p118 = scmp.eq.s32.totalorder %s17, 1
      %p119 = scmp.ne.s32.totalorder %s114, %s116
      %p120 = scmp.eq.s32.totalorder %s17, 0
      %p121 = por %p119, %p120
      %p122 = scmp.ne.s32.totalorder %s114, %s116
      %p123 = scmp.eq.s32.totalorder %s22, 1
      %p124 = por %p122, %p123
      %p125 = scmp.ne.s32.totalorder %s116, %s117
      %p126 = scmp.eq.s32.totalorder %s22, 0
      %p127 = por %p125, %p126
      %p128 = scmp.ne.s32.totalorder %s116, %s117
      %p129 = scmp.eq.s32.totalorder %s23, 1
      %p130 = por %p128, %p129
      %p132 = scmp.ne.s32.totalorder %s117, %s131
      %p133 = scmp.eq.s32.totalorder %s23, 0
      %p134 = por %p132, %p133
      %s136 = sadd.s32 %s135, 1
      %p139 = scmp.eq.s32.totalorder %s17, 1
      %p140 = scmp.ne.s32.totalorder %s135, %s137
      %p141 = scmp.eq.s32.totalorder %s17, 0
      %p142 = por %p140, %p141
      %p143 = scmp.ne.s32.totalorder %s135, %s137
      %p144 = scmp.eq.s32.totalorder %s22, 1
      %p145 = por %p143, %p144
      %p146 = scmp.ne.s32.totalorder %s137, %s138
      %p147 = scmp.eq.s32.totalorder %s22, 0
      %p148 = por %p146, %p147
      %p149 = scmp.ne.s32.totalorder %s137, %s138
      %p150 = scmp.eq.s32.totalorder %s23, 1
      %p151 = por %p149, %p150
      %p153 = scmp.ne.s32.totalorder %s138, %s152
      %p154 = scmp.eq.s32.totalorder %s23, 0
      %p155 = por %p153, %p154
      %s157 = sadd.s32 %s156, 1
      %p160 = scmp.eq.s32.totalorder %s17, 1
      %p161 = scmp.ne.s32.totalorder %s156, %s158
      %p162 = scmp.eq.s32.totalorder %s17, 0
      %p163 = por %p161, %p162
      %p164 = scmp.ne.s32.totalorder %s156, %s158
      %p165 = scmp.eq.s32.totalorder %s22, 1
      %p166 = por %p164, %p165
      %p167 = scmp.ne.s32.totalorder %s158, %s159
      %p168 = scmp.eq.s32.totalorder %s22, 0
      %p169 = por %p167, %p168
      %p170 = scmp.ne.s32.totalorder %s158, %s159
      %p171 = scmp.eq.s32.totalorder %s23, 1
      %p172 = por %p170, %p171
      %p174 = scmp.ne.s32.totalorder %s159, %s173
      %p175 = scmp.eq.s32.totalorder %s23, 0
      %p176 = por %p174, %p175
      %s177 = ssub.s32 %s17, %s24
      %p178 = scmp.eq.s32.totalorder %s177, 0
      %s180 = sadd.s32 %s179, 1
      %s181 = scalar_select %p178, %s179, %s180
      %p184 = pneg %p178
      %p185 = scmp.eq.s32.totalorder %s17, 1
      %p186 = por %p184, %p185
      %p187 = scmp.ne.s32.totalorder %s179, %s182
      %p188 = scmp.eq.s32.totalorder %s17, 0
      %p189 = por %p187, %p188
      %p190 = scmp.ne.s32.totalorder %s179, %s182
      %p191 = scmp.eq.s32.totalorder %s22, 1
      %p192 = por %p190, %p191
      %p193 = scmp.ne.s32.totalorder %s182, %s183
      %p194 = scmp.eq.s32.totalorder %s22, 0
      %p195 = por %p193, %p194
      %p196 = scmp.ne.s32.totalorder %s182, %s183
      %p197 = scmp.eq.s32.totalorder %s23, 1
      %p198 = por %p196, %p197
      %p200 = scmp.ne.s32.totalorder %s183, %s199
      %p201 = scmp.eq.s32.totalorder %s23, 0
      %p202 = por %p200, %p201
      %p203 = scmp.le.s32.totalorder 1, %s17
      %p204 = scmp.lt.s32.totalorder %s17, 3
      %p205 = pnand %p203, %p204
      %p206 = pneg %p205
      // Predicated region
      $region9: #{multi_task_news_feed_forward.1} parent=5 // pred_check
        _
      $region10: #{multi_task_news_feed_forward.1} parent=5 // pred_check_branch
        %208 = sbr.rel (%p205) target = $region12
      $region11: #{multi_task_news_feed_forward.1} parent=5 // pred_region
        %s209 = ssub.s32 %s17, 1
        // Predicated region
        $region13: #{multi_task_news_feed_forward.1} parent=11 // pred_check
          %p210 = pneg %p64
        $region14: #{multi_task_news_feed_forward.1} parent=11 // pred_check_branch
          %212 = sbr.rel (%p210) target = $region16
        $region15: #{multi_task_news_feed_forward.1} parent=11 // pred_region
          %s214 = ssub.s32 512, 512
          %215 = vsyncadd [#allocation5], %s214
          %s216 = sshll.u32 [#allocation4], 4
          %s217 = int_to_ptr.vmem [resolvable:$true] %s216
          %222 = dma.hbm_to_vmem [thread:$0]  %s1, 512, %s217, [#allocation5], 128, 128, 8
        $region16: #{multi_task_news_feed_forward.1} parent=11 // pred_fallthru
          _
        // Predicated region
        $region17: #{multi_task_news_feed_forward.1} parent=11 // pred_check
          %p223 = pneg %p85
        $region18: #{multi_task_news_feed_forward.1} parent=11 // pred_check_branch
          %225 = sbr.rel (%p223) target = $region20
        $region19: #{multi_task_news_feed_forward.1} parent=11 // pred_region
          _
        $region20: #{multi_task_news_feed_forward.1} parent=11 // pred_fallthru
          _
        // Predicated region
        $region21: #{multi_task_news_feed_forward.1} parent=11 // pred_check
          %p226 = pneg %p106
        $region22: #{multi_task_news_feed_forward.1} parent=11 // pred_check_branch
          %228 = sbr.rel (%p226) target = $region24
        $region23: #{multi_task_news_feed_forward.1} parent=11 // pred_region
          _
        $region24: #{multi_task_news_feed_forward.1} parent=11 // pred_fallthru
          _
        // Predicated region
        $region25: #{multi_task_news_feed_forward.1} parent=11 // pred_check
          %p229 = pneg %p127
        $region26: #{multi_task_news_feed_forward.1} parent=11 // pred_check_branch
          %231 = sbr.rel (%p229) target = $region28
        $region27: #{multi_task_news_feed_forward.1} parent=11 // pred_region
          _
        $region28: #{multi_task_news_feed_forward.1} parent=11 // pred_fallthru
          _
        // Predicated region
        $region29: #{multi_task_news_feed_forward.1} parent=11 // pred_check
          %p232 = pneg %p148
        $region30: #{multi_task_news_feed_forward.1} parent=11 // pred_check_branch
          %234 = sbr.rel (%p232) target = $region32
        $region31: #{multi_task_news_feed_forward.1} parent=11 // pred_region
          _
        $region32: #{multi_task_news_feed_forward.1} parent=11 // pred_fallthru
          _
        // Predicated region
        $region33: #{multi_task_news_feed_forward.1} parent=11 // pred_check
          %p235 = pneg %p169
        $region34: #{multi_task_news_feed_forward.1} parent=11 // pred_check_branch
          %237 = sbr.rel (%p235) target = $region36
        $region35: #{multi_task_news_feed_forward.1} parent=11 // pred_region
          _
        $region36: #{multi_task_news_feed_forward.1} parent=11 // pred_fallthru
          _
      $region12: #{multi_task_news_feed_forward.1} parent=5 // pred_fallthru
        _
      %p238 = scmp.lt.s32.totalorder %s17, 2
      // Predicated region
      $region37: #{multi_task_news_feed_forward.1} parent=5 // pred_check
        %p239 = pneg %p238
      $region38: #{multi_task_news_feed_forward.1} parent=5 // pred_check_branch
        %241 = sbr.rel (%p239) target = $region40
      $region39: #{multi_task_news_feed_forward.1} parent=5 // pred_region
        // Predicated region
        $region41: #{multi_task_news_feed_forward.1} parent=39 // pred_check
          %p242 = pneg %p37
        $region42: #{multi_task_news_feed_forward.1} parent=39 // pred_check_branch
          %244 = sbr.rel (%p242) target = $region44
        $region43: #{multi_task_news_feed_forward.1} parent=39 // pred_region
          %s245 = sand.u32 %s27, 1
          %s246 = scalar_lea.sflag [#allocation3], %s245
          %s247 = sand.u32 %s27, 1
          %s248 = smul.addr %s247, 8
          %s249 = scalar_lea.vmem [#allocation2], %s248
          %s251 = ssub.s32 128, 128
          %252 = vsyncadd %s246, %s251
          %s253 = smul.addr %s17, 128
          %s254 = scalar_lea.hbm %s0, %s253
          %s256 = sshll.u32 %s249, 4
          %s257 = int_to_ptr.vmem [resolvable:$true] %s256
          %259 = dma.hbm_to_vmem [thread:$0]  %s254, 128, %s257, %s246
        $region44: #{multi_task_news_feed_forward.1} parent=39 // pred_fallthru
          _
      $region40: #{multi_task_news_feed_forward.1} parent=5 // pred_fallthru
        _
      %p260 = scmp.le.s32.totalorder 1, %s17
      %p261 = scmp.lt.s32.totalorder %s17, 3
      %p262 = pnand %p260, %p261
      %p263 = pneg %p262
      // Predicated region
      $region45: #{multi_task_news_feed_forward.1} parent=5 // pred_check
        _
      $region46: #{multi_task_news_feed_forward.1} parent=5 // pred_check_branch
        %265 = sbr.rel (%p262) target = $region48
      $region47: #{multi_task_news_feed_forward.1} parent=5 // pred_region
        %s266 = ssub.s32 %s17, 1
        %s267 = sand.u32 %s30, 1
        %s268 = scalar_lea.sflag [#allocation3], %s267
        %s269 = sand.u32 %s30, 1
        %s270 = smul.addr %s269, 8
        %s271 = scalar_lea.vmem [#allocation2], %s270
        // Predicated region
        $region49: #{multi_task_news_feed_forward.1} parent=47 // pred_check
          %p272 = pneg %p43
        $region50: #{multi_task_news_feed_forward.1} parent=47 // pred_check_branch
          %274 = sbr.rel (%p272) target = $region52
        $region51: #{multi_task_news_feed_forward.1} parent=47 // pred_region
          %275 = dma.done %s268, 128
        $region52: #{multi_task_news_feed_forward.1} parent=47 // pred_fallthru
          _
        // Predicated region
        $region53: #{multi_task_news_feed_forward.1} parent=47 // pred_check
          %p276 = pneg %p64
        $region54: #{multi_task_news_feed_forward.1} parent=47 // pred_check_branch
          %278 = sbr.rel (%p276) target = $region56
        $region55: #{multi_task_news_feed_forward.1} parent=47 // pred_region
          %279 = dma.done [#allocation5], 512
        $region56: #{multi_task_news_feed_forward.1} parent=47 // pred_fallthru
          _
        %s280 = sand.u32 %s30, 1
        %s281 = scalar_lea.sflag [#allocation3], %s280
        %s282 = sand.u32 %s30, 1
        %s283 = smul.addr %s282, 8
        %s284 = scalar_lea.vmem [#allocation2], %s283
        %p285 = pneg %p43
        %p286 = pneg %p40
        %p287 = pneg %p64
        %p288 = pneg %p61
        %p289 = pneg %p85
        %p290 = pneg %p82
        %p291 = pneg %p106
        %p292 = pneg %p103
        %p293 = pneg %p127
        %p294 = pneg %p124
        %p295 = pneg %p148
        %p296 = pneg %p145
        %p297 = pneg %p169
        %p298 = pneg %p166
        %p299 = pneg %p195
        %p300 = pneg %p192
        %p301 = scmp.lt.s32.totalorder %s22, 1
        %s302 = scalar_select %p301, %s22, 1
        %s303 = smul.addr %s302, 8
        %s304 = scalar_lea.vmem %s7, %s303
        %p305 = scmp.lt.s32.totalorder %s22, 1
        %s306 = scalar_select %p305, %s22, 1
        %s307 = smul.addr %s306, 8
        %s308 = scalar_lea.vmem %s7, %s307
        %v309 = vld [vmem:[%s271] sm:$0xff]
        %v310 = vld [vmem:[#allocation4] sm:$0xff]
        %v311 = vld [vmem:[#allocation4 + $0x8] sm:$0xff]
        %v312 = vld [vmem:[#allocation4 + $0x10] sm:$0xff]
        %v313 = vld [vmem:[#allocation4 + $0x18] sm:$0xff]
        %v314 = vld [vmem:[%s2] sm:$0x1]
        %v316 = vlaneseq
        %v317 = vshrl.u32 %v316, 7
        %v318 = vsub.s32 0, %v317
        %v319 = vrot.slane %v314, %v318
        %vm321 = vcmask 261120
        %v323 = vsel %vm321, %v309, 0
        %325 = vmatprep.subr.mxu0 0.0
        %326 = vmatpush1.msra.mxu0 %v310
        %327 = vmatprep.subr.mxu0 0.0
        %328 = vmatpush1.msra.mxu0 %v311
        %329 = vmatprep.subr.mxu0 0.0
        %330 = vmatpush1.msra.mxu0 %v312
        %331 = vmatprep.subr.mxu0 0.0
        %332 = vmatpush1.msra.mxu0 %v313
        %333 = vmatprep.subr.mxu0 0.0
        %334 = vmatpush1.msra.mxu0 0.0
        %335 = vmatprep.subr.mxu0 0.0
        %336 = vmatpush1.msra.mxu0 0.0
        %337 = vmatprep.subr.mxu0 0.0
        %338 = vmatpush1.msra.mxu0 0.0
        %339 = vmatprep.subr.mxu0 0.0
        %340 = vmatpush1.msra.mxu0 0.0
        %341 = vmatprep.subr.mxu0 0.0
        %342 = vmatpush1.msra.mxu0 0.0
        %343 = vmatprep.subr.mxu0 0.0
        %344 = vmatpush1.msra.mxu0 0.0
        %345 = vmatprep.subr.mxu0 0.0
        %346 = vmatpush1.msra.mxu0 0.0
        %347 = vmatprep.subr.mxu0 0.0
        %348 = vmatpush1.msra.mxu0 0.0
        %349 = vmatprep.subr.mxu0 0.0
        %350 = vmatpush1.msra.mxu0 0.0
        %351 = vmatprep.subr.mxu0 0.0
        %352 = vmatpush1.msra.mxu0 0.0
        %353 = vmatprep.subr.mxu0 0.0
        %354 = vmatpush1.msra.mxu0 0.0
        %355 = vmatprep.subr.mxu0 0.0
        %356 = vmatpush1.msra.mxu0 0.0
        %357 = vmatprep.subr.mxu0 0.0
        %358 = vmatpush1.msra.mxu0 0.0
        %359 = vmatprep.subr.mxu0 0.0
        %360 = vmatpush1.msra.mxu0 0.0
        %361 = vmatprep.subr.mxu0 0.0
        %362 = vmatpush1.msra.mxu0 0.0
        %363 = vmatprep.subr.mxu0 0.0
        %364 = vmatpush1.msra.mxu0 0.0
        %365 = vmatprep.subr.mxu0 0.0
        %366 = vmatpush1.msra.mxu0 0.0
        %367 = vmatprep.subr.mxu0 0.0
        %368 = vmatpush1.msra.mxu0 0.0
        %369 = vmatprep.subr.mxu0 0.0
        %370 = vmatpush1.msra.mxu0 0.0
        %371 = vmatprep.subr.mxu0 0.0
        %372 = vmatpush1.msra.mxu0 0.0
        %373 = vmatprep.subr.mxu0 0.0
        %374 = vmatpush1.msra.mxu0 0.0
        %375 = vmatprep.subr.mxu0 0.0
        %376 = vmatpush1.msra.mxu0 0.0
        %377 = vmatprep.subr.mxu0 0.0
        %378 = vmatpush1.msra.mxu0 0.0
        %379 = vmatprep.subr.mxu0 0.0
        %380 = vmatpush1.msra.mxu0 0.0
        %381 = vmatprep.subr.mxu0 0.0
        %382 = vmatpush1.msra.mxu0 0.0
        %383 = vmatprep.subr.mxu0 0.0
        %384 = vmatpush1.msra.mxu0 0.0
        %385 = vmatprep.subr.mxu0 0.0
        %386 = vmatpush1.msra.mxu0 0.0
        %387 = vmatprep.subr.mxu0 0.0
        %388 = vmatpush1.msra.mxu0 0.0
        %389 = vmatprep.mubr.f32.mxu0 0.0
        %390 = vmatmul.mubr.f32.gmra.mrb[0].mxu0 %v323
        %v391 = vpop.f32.mrb[0].mxu0
        %v392 = vadd.f32 %v319, %v391
        %v393 = vpop.f32.mrb[0].mxu0
        %394 = vdwg.mxu0
        %v395 = vmax.f32 %v392, 0.0
        %v396 = vld [vmem:[%s3] sm:$0xff]
        %v397 = vld [vmem:[%s3 + $0x8] sm:$0xff]
        %v398 = vld [vmem:[%s3 + $0x10] sm:$0xff]
        %v399 = vld [vmem:[%s3 + $0x18] sm:$0xff]
        %v400 = vld [vmem:[%s3 + $0x20] sm:$0xff]
        %v401 = vld [vmem:[%s3 + $0x28] sm:$0xff]
        %v402 = vld [vmem:[%s3 + $0x30] sm:$0xff]
        %v403 = vld [vmem:[%s3 + $0x38] sm:$0xff]
        %v404 = vld [vmem:[%s4] sm:$0x1]
        %v406 = vlaneseq
        %v407 = vshrl.u32 %v406, 7
        %v408 = vsub.s32 0, %v407
        %v409 = vrot.slane %v404, %v408
        %vm411 = vcmask 523264
        %v413 = vsel %vm411, %v395, 0
        %415 = vmatprep.subr.mxu0 0.0
        %416 = vmatpush1.msra.mxu0 %v396
        %417 = vmatprep.subr.mxu0 0.0
        %418 = vmatpush1.msra.mxu0 %v397
        %419 = vmatprep.subr.mxu0 0.0
        %420 = vmatpush1.msra.mxu0 %v398
        %421 = vmatprep.subr.mxu0 0.0
        %422 = vmatpush1.msra.mxu0 %v399
        %423 = vmatprep.subr.mxu0 0.0
        %424 = vmatpush1.msra.mxu0 %v400
        %425 = vmatprep.subr.mxu0 0.0
        %426 = vmatpush1.msra.mxu0 %v401
        %427 = vmatprep.subr.mxu0 0.0
        %428 = vmatpush1.msra.mxu0 %v402
        %429 = vmatprep.subr.mxu0 0.0
        %430 = vmatpush1.msra.mxu0 %v403
        %431 = vmatprep.subr.mxu0 0.0
        %432 = vmatpush1.msra.mxu0 0.0
        %433 = vmatprep.subr.mxu0 0.0
        %434 = vmatpush1.msra.mxu0 0.0
        %435 = vmatprep.subr.mxu0 0.0
        %436 = vmatpush1.msra.mxu0 0.0
        %437 = vmatprep.subr.mxu0 0.0
        %438 = vmatpush1.msra.mxu0 0.0
        %439 = vmatprep.subr.mxu0 0.0
        %440 = vmatpush1.msra.mxu0 0.0
        %441 = vmatprep.subr.mxu0 0.0
        %442 = vmatpush1.msra.mxu0 0.0
        %443 = vmatprep.subr.mxu0 0.0
        %444 = vmatpush1.msra.mxu0 0.0
        %445 = vmatprep.subr.mxu0 0.0
        %446 = vmatpush1.msra.mxu0 0.0
        %447 = vmatprep.subr.mxu0 0.0
        %448 = vmatpush1.msra.mxu0 0.0
        %449 = vmatprep.subr.mxu0 0.0
        %450 = vmatpush1.msra.mxu0 0.0
        %451 = vmatprep.subr.mxu0 0.0
        %452 = vmatpush1.msra.mxu0 0.0
        %453 = vmatprep.subr.mxu0 0.0
        %454 = vmatpush1.msra.mxu0 0.0
        %455 = vmatprep.subr.mxu0 0.0
        %456 = vmatpush1.msra.mxu0 0.0
        %457 = vmatprep.subr.mxu0 0.0
        %458 = vmatpush1.msra.mxu0 0.0
        %459 = vmatprep.subr.mxu0 0.0
        %460 = vmatpush1.msra.mxu0 0.0
        %461 = vmatprep.subr.mxu0 0.0
        %462 = vmatpush1.msra.mxu0 0.0
        %463 = vmatprep.subr.mxu0 0.0
        %464 = vmatpush1.msra.mxu0 0.0
        %465 = vmatprep.subr.mxu0 0.0
        %466 = vmatpush1.msra.mxu0 0.0
        %467 = vmatprep.subr.mxu0 0.0
        %468 = vmatpush1.msra.mxu0 0.0
        %469 = vmatprep.subr.mxu0 0.0
        %470 = vmatpush1.msra.mxu0 0.0
        %471 = vmatprep.subr.mxu0 0.0
        %472 = vmatpush1.msra.mxu0 0.0
        %473 = vmatprep.subr.mxu0 0.0
        %474 = vmatpush1.msra.mxu0 0.0
        %475 = vmatprep.subr.mxu0 0.0
        %476 = vmatpush1.msra.mxu0 0.0
        %477 = vmatprep.subr.mxu0 0.0
        %478 = vmatpush1.msra.mxu0 0.0
        %479 = vmatprep.mubr.f32.mxu0 0.0
        %480 = vmatmul.mubr.f32.gmra.mrb[0].mxu0 %v413
        %v481 = vpop.f32.mrb[0].mxu0
        %v482 = vadd.f32 %v409, %v481
        %v483 = vpop.f32.mrb[0].mxu0
        %484 = vdwg.mxu0
        %v485 = vmax.f32 %v482, 0.0
        %v486 = vld [vmem:[%s5] sm:$0xff]
        %v487 = vld [vmem:[%s5 + $0x8] sm:$0xff]
        %v488 = vld [vmem:[%s5 + $0x10] sm:$0xff]
        %v489 = vld [vmem:[%s5 + $0x18] sm:$0xff]
        %v490 = vld [vmem:[%s5 + $0x20] sm:$0xff]
        %v491 = vld [vmem:[%s5 + $0x28] sm:$0xff]
        %v492 = vld [vmem:[%s5 + $0x30] sm:$0xff]
        %v493 = vld [vmem:[%s5 + $0x38] sm:$0xff]
        %v494 = vld [vmem:[%s6] sm:$0x1]
        %v496 = vlaneseq
        %v497 = vshrl.u32 %v496, 7
        %v498 = vsub.s32 0, %v497
        %v499 = vrot.slane %v494, %v498
        %v502 = vsel %vm411, %v485, 0
        %504 = vmatprep.subr.mxu0 0.0
        %505 = vmatpush1.msra.mxu0 %v486
        %506 = vmatprep.subr.mxu0 0.0
        %507 = vmatpush1.msra.mxu0 %v487
        %508 = vmatprep.subr.mxu0 0.0
        %509 = vmatpush1.msra.mxu0 %v488
        %510 = vmatprep.subr.mxu0 0.0
        %511 = vmatpush1.msra.mxu0 %v489
        %512 = vmatprep.subr.mxu0 0.0
        %513 = vmatpush1.msra.mxu0 %v490
        %514 = vmatprep.subr.mxu0 0.0
        %515 = vmatpush1.msra.mxu0 %v491
        %516 = vmatprep.subr.mxu0 0.0
        %517 = vmatpush1.msra.mxu0 %v492
        %518 = vmatprep.subr.mxu0 0.0
        %519 = vmatpush1.msra.mxu0 %v493
        %520 = vmatprep.subr.mxu0 0.0
        %521 = vmatpush1.msra.mxu0 0.0
        %522 = vmatprep.subr.mxu0 0.0
        %523 = vmatpush1.msra.mxu0 0.0
        %524 = vmatprep.subr.mxu0 0.0
        %525 = vmatpush1.msra.mxu0 0.0
        %526 = vmatprep.subr.mxu0 0.0
        %527 = vmatpush1.msra.mxu0 0.0
        %528 = vmatprep.subr.mxu0 0.0
        %529 = vmatpush1.msra.mxu0 0.0
        %530 = vmatprep.subr.mxu0 0.0
        %531 = vmatpush1.msra.mxu0 0.0
        %532 = vmatprep.subr.mxu0 0.0
        %533 = vmatpush1.msra.mxu0 0.0
        %534 = vmatprep.subr.mxu0 0.0
        %535 = vmatpush1.msra.mxu0 0.0
        %536 = vmatprep.subr.mxu0 0.0
        %537 = vmatpush1.msra.mxu0 0.0
        %538 = vmatprep.subr.mxu0 0.0
        %539 = vmatpush1.msra.mxu0 0.0
        %540 = vmatprep.subr.mxu0 0.0
        %541 = vmatpush1.msra.mxu0 0.0
        %542 = vmatprep.subr.mxu0 0.0
        %543 = vmatpush1.msra.mxu0 0.0
        %544 = vmatprep.subr.mxu0 0.0
        %545 = vmatpush1.msra.mxu0 0.0
        %546 = vmatprep.subr.mxu0 0.0
        %547 = vmatpush1.msra.mxu0 0.0
        %548 = vmatprep.subr.mxu0 0.0
        %549 = vmatpush1.msra.mxu0 0.0
        %550 = vmatprep.subr.mxu0 0.0
        %551 = vmatpush1.msra.mxu0 0.0
        %552 = vmatprep.subr.mxu0 0.0
        %553 = vmatpush1.msra.mxu0 0.0
        %554 = vmatprep.subr.mxu0 0.0
        %555 = vmatpush1.msra.mxu0 0.0
        %556 = vmatprep.subr.mxu0 0.0
        %557 = vmatpush1.msra.mxu0 0.0
        %558 = vmatprep.subr.mxu0 0.0
        %559 = vmatpush1.msra.mxu0 0.0
        %560 = vmatprep.subr.mxu0 0.0
        %561 = vmatpush1.msra.mxu0 0.0
        %562 = vmatprep.subr.mxu0 0.0
        %563 = vmatpush1.msra.mxu0 0.0
        %564 = vmatprep.subr.mxu0 0.0
        %565 = vmatpush1.msra.mxu0 0.0
        %566 = vmatprep.subr.mxu0 0.0
        %567 = vmatpush1.msra.mxu0 0.0
        %568 = vmatprep.mubr.f32.mxu0 0.0
        %569 = vmatmul.mubr.f32.gmra.mrb[0].mxu0 %v502
        %v570 = vpop.f32.mrb[0].mxu0
        %v571 = vadd.f32 %v499, %v570
        %v572 = vpop.f32.mrb[0].mxu0
        %573 = vdwg.mxu0
        %vm574 = vcmask 15360
        %575 = vst.msk [vmem:[%s308] sm:$0xff] %vm574, %v571
        %p576 = scmp.lt.s32.totalorder %s22, 1
        %s577 = scalar_select %p576, %s22, 1
        %s578 = smul.addr %s577, 8
        %s579 = scalar_lea.vmem %s7, %s578
        // Predicated region
        $region57: #{multi_task_news_feed_forward.1} parent=47 // pred_check
          %p580 = pneg %p192
        $region58: #{multi_task_news_feed_forward.1} parent=47 // pred_check_branch
          %582 = sbr.rel (%p580) target = $region60
        $region59: #{multi_task_news_feed_forward.1} parent=47 // pred_region
          _
        $region60: #{multi_task_news_feed_forward.1} parent=47 // pred_fallthru
          _
      $region48: #{multi_task_news_feed_forward.1} parent=5 // pred_fallthru
        _
      %p583 = scmp.le.s32.totalorder 2, %s17
      // Predicated region
      $region61: #{multi_task_news_feed_forward.1} parent=5 // pred_check
        %p584 = pneg %p583
      $region62: #{multi_task_news_feed_forward.1} parent=5 // pred_check_branch
        %586 = sbr.rel (%p584) target = $region64
      $region63: #{multi_task_news_feed_forward.1} parent=5 // pred_region
        %s587 = ssub.s32 %s17, 2
        // Predicated region
        $region65: #{multi_task_news_feed_forward.1} parent=63 // pred_check
          %p588 = pneg %p198
        $region66: #{multi_task_news_feed_forward.1} parent=63 // pred_check_branch
          %590 = sbr.rel (%p588) target = $region68
        $region67: #{multi_task_news_feed_forward.1} parent=63 // pred_region
          %p591 = scmp.lt.s32.totalorder %s23, 1
          %s592 = scalar_select %p591, %s23, 1
          %s593 = smul.addr %s592, 8
          %s594 = scalar_lea.vmem %s7, %s593
        $region68: #{multi_task_news_feed_forward.1} parent=63 // pred_fallthru
          _
      $region64: #{multi_task_news_feed_forward.1} parent=5 // pred_fallthru
        _
    $region6: #{multi_task_news_feed_forward.1} parent=1 // loop_footer
      %s21 = sadd.s32 1, %s17
    $region7: #{multi_task_news_feed_forward.1} parent=1 // loop_footer_branch
      %16 = sbr.rel target = $region3
    $region8: #{multi_task_news_feed_forward.1} parent=1 // loop_exit
      _
    %595 = vsyncpa [#allocation3], 1
    %s596 = scalar_lea.sflag [#allocation3], 1
    %597 = vsyncpa %s596, 1
    %598 = vsyncpa [#allocation5], 1

</llo_original>
